<compile_context>
chip_gen: v5e
topology: v5e:2x2
jax: 0.10.0
libtpu: 0.0.40
codegen_flags: <defaults>
</compile_context>

<pallas_src>
from functools import partial

import jax
import jax.numpy as jnp
from jax.experimental import pallas as pl
from jax.experimental.pallas import tpu as pltpu

T_PAD = 128  # lane-dense padded tag dimension for the final Linear output


def _ner_kernel(x_ref, wih_ref, whh_ref, b_ref, wlin_ref, blin_ref,
                logits_ref, h_ref):
    """One grid point = one sequence.

    x_ref      : (1, S, D)   f32   input sequence for this batch row
    wih_ref    : (D, 4D)     bf16  gate-fused input weights (i|f|g|o, sigmoid cols pre-scaled by 0.5)
    whh_ref    : (D, 4D)     bf16  gate-fused hidden weights (same pre-scaling)
    b_ref      : (1, 4D)     f32   combined bias (b_ih + b_hh, sigmoid cols pre-scaled by 0.5)
    wlin_ref   : (D, T_PAD)  bf16  final linear weight, transposed + zero-padded
    blin_ref   : (1, T_PAD)  f32   final linear bias, zero-padded
    logits_ref : (1, S, T_PAD) f32 out: padded logits (sliced to tags in wrapper)
    h_ref      : (1, 1, S*D)  f32  out: lane-dense LeakyReLU(lstm hidden) slab
    """
    _, S, D = x_ref.shape
    G = 4 * D

    # Hoisted, time-major input projection for ALL timesteps: one bf16 MXU matmul.
    x_all = x_ref[0].astype(jnp.bfloat16)                                # (S, D)
    xg = (jnp.dot(x_all, wih_ref[...], preferred_element_type=jnp.float32)
          + b_ref[...])                                                  # (S, 4D) f32

    whh = whh_ref[...]                                                   # (D, 4D) bf16

    # Lane mask selecting the g (tanh) gate block; i/f/o get sigmoid = 0.5*t+0.5.
    lane = jax.lax.broadcasted_iota(jnp.int32, (1, G), 1)
    g_mask = (lane >= 2 * D) & (lane < 3 * D)

    # Recurrence: h/c live in vregs; S is small & static -> unrolled loop.
    h = jnp.zeros((1, D), jnp.float32)
    c = jnp.zeros((1, D), jnp.float32)
    h_steps = []
    for t in range(S):
        g_pre = xg[t:t + 1, :] + jnp.dot(h.astype(jnp.bfloat16), whh,
                                         preferred_element_type=jnp.float32)  # (1, 4D)
        # One full-width tanh (EUP) + a VPU select recovers all four gates.
        t_all = jnp.tanh(g_pre)
        act = jnp.where(g_mask, t_all, 0.5 * t_all + 0.5)

        i_g = act[:, 0 * D:1 * D]
        f_g = act[:, 1 * D:2 * D]
        g_g = act[:, 2 * D:3 * D]
        o_g = act[:, 3 * D:4 * D]

        c = f_g * c + i_g * g_g
        h = o_g * jnp.tanh(c)

        # LeakyReLU (default negative_slope = 0.01) on the *output* copy only.
        h_steps.append(jnp.where(h > 0.0, h, 0.01 * h))

    # Lane-dense single store of all hidden activations: (1, S*D).
    h_slab = jnp.concatenate(h_steps, axis=1)                            # (1, S*D)
    h_ref[...] = h_slab.reshape(1, 1, S * D)

    # Deferred final Linear: time-major rows, one bf16 matmul + lane-dense store.
    h_mat = jnp.concatenate(h_steps, axis=0)                             # (S, D)
    logits = (jnp.dot(h_mat.astype(jnp.bfloat16), wlin_ref[...],
                      preferred_element_type=jnp.float32)
              + blin_ref[...])                                           # (S, T_PAD)
    logits_ref[...] = logits.reshape(1, S, T_PAD)


def pack_params(params):
    """One-time weight packing (outside the per-call hot path).

    PyTorch LSTM weights are (4D, D) with gates stacked [i, f, g, o]; the
    pre-activation is x @ W.T, so the fused transposed weight is W.T with
    column blocks [i | f | g | o].  The sigmoid gate columns (i, f, o) and the
    corresponding bias entries are pre-scaled by 0.5 so the kernel can use a
    single full-width tanh: sigmoid(z) = 0.5 * tanh(z/2) + 0.5.
    Matmul weights are stored bf16 (native MXU input); biases stay f32.
    """
    D = params["w_hh"].shape[1]
    T = params["w_lin"].shape[0]

    col = jnp.arange(4 * D)
    is_g_col = (col >= 2 * D) & (col < 3 * D)
    scale = jnp.where(is_g_col, 1.0, 0.5).astype(jnp.float32)            # (4D,)

    wih = params["w_ih"].T.astype(jnp.float32) * scale[None, :]          # (D, 4D)
    whh = params["w_hh"].T.astype(jnp.float32) * scale[None, :]          # (D, 4D)
    b = ((params["b_ih"] + params["b_hh"]).astype(jnp.float32)
         * scale).reshape(1, 4 * D)                                      # (1, 4D)

    wlin = jnp.zeros((D, T_PAD), jnp.float32).at[:, :T].set(params["w_lin"].T)
    blin = jnp.zeros((1, T_PAD), jnp.float32).at[:, :T].set(params["b_lin"])

    return {
        "wih": wih.astype(jnp.bfloat16),
        "whh": whh.astype(jnp.bfloat16),
        "b": b,                                   # f32
        "wlin": wlin.astype(jnp.bfloat16),
        "blin": blin,                             # f32
    }


@partial(jax.jit, static_argnums=(2,))
def ner_net_forward(x, packed, tags):
    """Forward: batch-parallel pallas_call on pre-packed parameters."""
    B, S, D = x.shape
    G = 4 * D

    logits_pad, h_slab = pl.pallas_call(
        _ner_kernel,
        out_shape=(jax.ShapeDtypeStruct((B, S, T_PAD), jnp.float32),
                   jax.ShapeDtypeStruct((B, 1, S * D), jnp.float32)),
        grid=(B,),  # one sequence per grid point -> shards across v7x TensorCores
        in_specs=[
            pl.BlockSpec((1, S, D), lambda b: (b, 0, 0)),
            pl.BlockSpec((D, G), lambda b: (0, 0)),
            pl.BlockSpec((D, G), lambda b: (0, 0)),
            pl.BlockSpec((1, G), lambda b: (0, 0)),
            pl.BlockSpec((D, T_PAD), lambda b: (0, 0)),
            pl.BlockSpec((1, T_PAD), lambda b: (0, 0)),
        ],
        out_specs=(
            pl.BlockSpec((1, S, T_PAD), lambda b: (b, 0, 0)),
            pl.BlockSpec((1, 1, S * D), lambda b: (b, 0, 0)),
        ),
        compiler_params=pltpu.CompilerParams(
            dimension_semantics=("parallel",)),
    )(x, packed["wih"], packed["whh"], packed["b"],
      packed["wlin"], packed["blin"])

    # Slice the lane padding away inside the jitted wrapper (API-safe).
    logits = logits_pad.reshape(B * S, T_PAD)[:, :tags]
    # LstmFlatten: x[0].squeeze(1) -> only squeezes when S == 1 (static shape).
    h = h_slab.reshape(B, S, D)
    if S == 1:
        h = h.reshape(B, D)
    return logits, h


def ref_forward(x, params):
    """Pure-JAX f32 reference mirroring the PyTorch forward (eval mode)."""
    B, S, D = x.shape
    w_ih, w_hh = params["w_ih"], params["w_hh"]
    b_ih, b_hh = params["b_ih"], params["b_hh"]

    def step(carry, x_t):
        h, c = carry
        gates = x_t @ w_ih.T + b_ih + h @ w_hh.T + b_hh
        i, f, g, o = jnp.split(gates, 4, axis=-1)
        i, f, g, o = jax.nn.sigmoid(i), jax.nn.sigmoid(f), jnp.tanh(g), jax.nn.sigmoid(o)
        c = f * c + i * g
        h = o * jnp.tanh(c)
        return (h, c), h

    init = (jnp.zeros((B, D), jnp.float32), jnp.zeros((B, D), jnp.float32))
    _, hs = jax.lax.scan(step, init, jnp.transpose(x, (1, 0, 2)))
    out = jnp.transpose(hs, (1, 0, 2))                   # (B, S, D)
    if S == 1:
        out = out.reshape(B, D)
    h_act = jnp.where(out > 0, out, 0.01 * out)          # LeakyReLU
    flat = h_act.reshape(-1, D)                          # Flatten (+ Dropout = id)
    logits = flat @ params["w_lin"].T + params["b_lin"]
    return logits, h_act


def init_params(key, emb_dim, tags):
    """Deterministic init mimicking PyTorch's uniform(-1/sqrt(H), 1/sqrt(H))."""
    ks = jax.random.split(key, 6)
    bound = 1.0 / jnp.sqrt(jnp.float32(emb_dim))
    u = lambda k, shape: jax.random.uniform(k, shape, jnp.float32, -bound, bound)
    return {
        "w_ih": u(ks[0], (4 * emb_dim, emb_dim)),
        "w_hh": u(ks[1], (4 * emb_dim, emb_dim)),
        "b_ih": u(ks[2], (4 * emb_dim,)),
        "b_hh": u(ks[3], (4 * emb_dim,)),
        "w_lin": u(ks[4], (tags, emb_dim)),
        "b_lin": u(ks[5], (tags,)),
    }
    # TODO(synk): Dropout is treated as identity (inference mode); training-mode
    # stochastic dropout would use pltpu.prng_seed / pltpu.stateful_bernoulli.


if __name__ == "__main__":
    B, S, EMB_DIM, TAGS = 2, 8, 32, 5   # small shapes: batch=2, seq=8, emb_dim=32, tags=5

    key = jax.random.PRNGKey(0)
    k_x, k_p = jax.random.split(key)
    x = jax.random.normal(k_x, (B, S, EMB_DIM), dtype=jnp.float32)
    params = init_params(k_p, EMB_DIM, TAGS)

    packed = pack_params(params)        # one-time packing, outside the hot path
    logits, h = ner_net_forward(x, packed, TAGS)
    jax.block_until_ready((logits, h))

    logits_ref, h_ref = ref_forward(x, params)
    assert logits.shape == (B * S, TAGS), logits.shape
    assert h.shape == (B, S, EMB_DIM), h.shape
    # bf16 MXU inputs -> tolerances relaxed vs. the f32 reference (per review).
    assert jnp.allclose(h, h_ref, atol=2e-2, rtol=2e-2), "hidden mismatch"
    assert jnp.allclose(logits, logits_ref, atol=5e-2, rtol=5e-2), "logits mismatch"

    print("KERNEL_OK")
</pallas_src>

<mosaic_0001>
module attributes {stable_mosaic.version = 11 : i64} {
  func.func @_ner_kernel(%arg0: i32, %arg1: memref<1x8x32xf32, #tpu.memory_space<vmem>>, %arg2: memref<32x128xbf16, #tpu.memory_space<vmem>>, %arg3: memref<32x128xbf16, #tpu.memory_space<vmem>>, %arg4: memref<1x128xf32, #tpu.memory_space<vmem>>, %arg5: memref<32x128xbf16, #tpu.memory_space<vmem>>, %arg6: memref<1x128xf32, #tpu.memory_space<vmem>>, %arg7: memref<1x8x128xf32, #tpu.memory_space<vmem>>, %arg8: memref<1x1x256xf32, #tpu.memory_space<vmem>>) attributes {dimension_semantics = [#tpu.dimension_semantics<parallel>], iteration_bounds = array<i64: 2>, scalar_prefetch = 0 : i64, scratch_operands = 0 : i64, tpu.core_type = #tpu.core_type<tc>, window_params = [{transform_indices = @transform_0, window_bounds = array<i64: 1, 8, 32>}, {pipeline_mode = #tpu.pipeline_mode<synchronous>, transform_indices = @transform_1, window_bounds = array<i64: 32, 128>}, {pipeline_mode = #tpu.pipeline_mode<synchronous>, transform_indices = @transform_2, window_bounds = array<i64: 32, 128>}, {pipeline_mode = #tpu.pipeline_mode<synchronous>, transform_indices = @transform_3, window_bounds = array<i64: 1, 128>}, {pipeline_mode = #tpu.pipeline_mode<synchronous>, transform_indices = @transform_4, window_bounds = array<i64: 32, 128>}, {pipeline_mode = #tpu.pipeline_mode<synchronous>, transform_indices = @transform_5, window_bounds = array<i64: 1, 128>}, {transform_indices = @transform_6, window_bounds = array<i64: 1, 8, 128>}, {transform_indices = @transform_7, window_bounds = array<i64: 1, 1, 256>}]} {
    %c0 = arith.constant 0 : index
    %c0_0 = arith.constant 0 : index
    %c0_1 = arith.constant 0 : index
    %0 = vector.load %arg1[%c0, %c0_0, %c0_1] : memref<1x8x32xf32, #tpu.memory_space<vmem>>, vector<1x8x32xf32>
    %1 = vector.shape_cast %0 : vector<1x8x32xf32> to vector<8x32xf32>
    %2 = arith.truncf %1 : vector<8x32xf32> to vector<8x32xbf16>
    %c0_2 = arith.constant 0 : index
    %c0_3 = arith.constant 0 : index
    %3 = vector.load %arg2[%c0_2, %c0_3] : memref<32x128xbf16, #tpu.memory_space<vmem>>, vector<32x128xbf16>
    %cst = arith.constant dense<0.000000e+00> : vector<8x128xf32>
    %4 = tpu.matmul %2, %3, %cst {dimension_numbers = #tpu.dot_dimension_numbers<[1], [0], [0], [1], [0, 0, 1, 1], [], []>} : vector<8x32xbf16>, vector<32x128xbf16>, vector<8x128xf32> -> vector<8x128xf32>
    %c0_4 = arith.constant 0 : index
    %c0_5 = arith.constant 0 : index
    %5 = vector.load %arg4[%c0_4, %c0_5] : memref<1x128xf32, #tpu.memory_space<vmem>>, vector<1x128xf32>
    %6 = vector.broadcast %5 : vector<1x128xf32> to vector<8x128xf32>
    %7 = arith.addf %4, %6 : vector<8x128xf32>
    %c0_6 = arith.constant 0 : index
    %c0_7 = arith.constant 0 : index
    %8 = vector.load %arg3[%c0_6, %c0_7] : memref<32x128xbf16, #tpu.memory_space<vmem>>, vector<32x128xbf16>
    %9 = tpu.iota {dimensions = array<i32: 1>} : vector<1x128xi32>
    %c64_i32 = arith.constant 64 : i32
    %10 = vector.broadcast %c64_i32 : i32 to vector<1x128xi32>
    %11 = arith.cmpi sge, %9, %10 : vector<1x128xi32>
    %c96_i32 = arith.constant 96 : i32
    %12 = vector.broadcast %c96_i32 : i32 to vector<1x128xi32>
    %13 = arith.cmpi slt, %9, %12 : vector<1x128xi32>
    %14 = arith.andi %11, %13 : vector<1x128xi1>
    %cst_8 = arith.constant 0.000000e+00 : f32
    %15 = vector.broadcast %cst_8 : f32 to vector<1x32xf32>
    %cst_9 = arith.constant 0.000000e+00 : f32
    %16 = vector.broadcast %cst_9 : f32 to vector<1x32xf32>
    %17 = vector.extract_strided_slice %7 {offsets = [0, 0], sizes = [1, 128], strides = [1, 1]} : vector<8x128xf32> to vector<1x128xf32>
    %18 = arith.truncf %15 : vector<1x32xf32> to vector<1x32xbf16>
    %cst_10 = arith.constant dense<0.000000e+00> : vector<1x128xf32>
    %19 = tpu.matmul %18, %8, %cst_10 {dimension_numbers = #tpu.dot_dimension_numbers<[1], [0], [0], [1], [0, 0, 1, 1], [], []>} : vector<1x32xbf16>, vector<32x128xbf16>, vector<1x128xf32> -> vector<1x128xf32>
    %20 = arith.addf %17, %19 : vector<1x128xf32>
    %21 = math.tanh %20 : vector<1x128xf32>
    %cst_11 = arith.constant 5.000000e-01 : f32
    %22 = vector.broadcast %cst_11 : f32 to vector<1x128xf32>
    %23 = arith.mulf %22, %21 : vector<1x128xf32>
    %cst_12 = arith.constant 5.000000e-01 : f32
    %24 = vector.broadcast %cst_12 : f32 to vector<1x128xf32>
    %25 = arith.addf %23, %24 : vector<1x128xf32>
    %26 = arith.select %14, %21, %25 : vector<1x128xi1>, vector<1x128xf32>
    %27 = vector.extract_strided_slice %26 {offsets = [0, 0], sizes = [1, 32], strides = [1, 1]} : vector<1x128xf32> to vector<1x32xf32>
    %28 = vector.extract_strided_slice %26 {offsets = [0, 32], sizes = [1, 32], strides = [1, 1]} : vector<1x128xf32> to vector<1x32xf32>
    %29 = vector.extract_strided_slice %26 {offsets = [0, 64], sizes = [1, 32], strides = [1, 1]} : vector<1x128xf32> to vector<1x32xf32>
    %30 = vector.extract_strided_slice %26 {offsets = [0, 96], sizes = [1, 32], strides = [1, 1]} : vector<1x128xf32> to vector<1x32xf32>
    %31 = arith.mulf %28, %16 : vector<1x32xf32>
    %32 = arith.mulf %27, %29 : vector<1x32xf32>
    %33 = arith.addf %31, %32 : vector<1x32xf32>
    %34 = math.tanh %33 : vector<1x32xf32>
    %35 = arith.mulf %30, %34 : vector<1x32xf32>
    %cst_13 = arith.constant 0.000000e+00 : f32
    %36 = vector.broadcast %cst_13 : f32 to vector<1x32xf32>
    %37 = arith.cmpf ogt, %35, %36 : vector<1x32xf32>
    %cst_14 = arith.constant 0.00999999977 : f32
    %38 = vector.broadcast %cst_14 : f32 to vector<1x32xf32>
    %39 = arith.mulf %38, %35 : vector<1x32xf32>
    %40 = arith.select %37, %35, %39 : vector<1x32xi1>, vector<1x32xf32>
    %41 = vector.extract_strided_slice %7 {offsets = [1, 0], sizes = [1, 128], strides = [1, 1]} : vector<8x128xf32> to vector<1x128xf32>
    %42 = arith.truncf %35 : vector<1x32xf32> to vector<1x32xbf16>
    %cst_15 = arith.constant dense<0.000000e+00> : vector<1x128xf32>
    %43 = tpu.matmul %42, %8, %cst_15 {dimension_numbers = #tpu.dot_dimension_numbers<[1], [0], [0], [1], [0, 0, 1, 1], [], []>} : vector<1x32xbf16>, vector<32x128xbf16>, vector<1x128xf32> -> vector<1x128xf32>
    %44 = arith.addf %41, %43 : vector<1x128xf32>
    %45 = math.tanh %44 : vector<1x128xf32>
    %cst_16 = arith.constant 5.000000e-01 : f32
    %46 = vector.broadcast %cst_16 : f32 to vector<1x128xf32>
    %47 = arith.mulf %46, %45 : vector<1x128xf32>
    %cst_17 = arith.constant 5.000000e-01 : f32
    %48 = vector.broadcast %cst_17 : f32 to vector<1x128xf32>
    %49 = arith.addf %47, %48 : vector<1x128xf32>
    %50 = arith.select %14, %45, %49 : vector<1x128xi1>, vector<1x128xf32>
    %51 = vector.extract_strided_slice %50 {offsets = [0, 0], sizes = [1, 32], strides = [1, 1]} : vector<1x128xf32> to vector<1x32xf32>
    %52 = vector.extract_strided_slice %50 {offsets = [0, 32], sizes = [1, 32], strides = [1, 1]} : vector<1x128xf32> to vector<1x32xf32>
    %53 = vector.extract_strided_slice %50 {offsets = [0, 64], sizes = [1, 32], strides = [1, 1]} : vector<1x128xf32> to vector<1x32xf32>
    %54 = vector.extract_strided_slice %50 {offsets = [0, 96], sizes = [1, 32], strides = [1, 1]} : vector<1x128xf32> to vector<1x32xf32>
    %55 = arith.mulf %52, %33 : vector<1x32xf32>
    %56 = arith.mulf %51, %53 : vector<1x32xf32>
    %57 = arith.addf %55, %56 : vector<1x32xf32>
    %58 = math.tanh %57 : vector<1x32xf32>
    %59 = arith.mulf %54, %58 : vector<1x32xf32>
    %cst_18 = arith.constant 0.000000e+00 : f32
    %60 = vector.broadcast %cst_18 : f32 to vector<1x32xf32>
    %61 = arith.cmpf ogt, %59, %60 : vector<1x32xf32>
    %cst_19 = arith.constant 0.00999999977 : f32
    %62 = vector.broadcast %cst_19 : f32 to vector<1x32xf32>
    %63 = arith.mulf %62, %59 : vector<1x32xf32>
    %64 = arith.select %61, %59, %63 : vector<1x32xi1>, vector<1x32xf32>
    %65 = vector.extract_strided_slice %7 {offsets = [2, 0], sizes = [1, 128], strides = [1, 1]} : vector<8x128xf32> to vector<1x128xf32>
    %66 = arith.truncf %59 : vector<1x32xf32> to vector<1x32xbf16>
    %cst_20 = arith.constant dense<0.000000e+00> : vector<1x128xf32>
    %67 = tpu.matmul %66, %8, %cst_20 {dimension_numbers = #tpu.dot_dimension_numbers<[1], [0], [0], [1], [0, 0, 1, 1], [], []>} : vector<1x32xbf16>, vector<32x128xbf16>, vector<1x128xf32> -> vector<1x128xf32>
    %68 = arith.addf %65, %67 : vector<1x128xf32>
    %69 = math.tanh %68 : vector<1x128xf32>
    %cst_21 = arith.constant 5.000000e-01 : f32
    %70 = vector.broadcast %cst_21 : f32 to vector<1x128xf32>
    %71 = arith.mulf %70, %69 : vector<1x128xf32>
    %cst_22 = arith.constant 5.000000e-01 : f32
    %72 = vector.broadcast %cst_22 : f32 to vector<1x128xf32>
    %73 = arith.addf %71, %72 : vector<1x128xf32>
    %74 = arith.select %14, %69, %73 : vector<1x128xi1>, vector<1x128xf32>
    %75 = vector.extract_strided_slice %74 {offsets = [0, 0], sizes = [1, 32], strides = [1, 1]} : vector<1x128xf32> to vector<1x32xf32>
    %76 = vector.extract_strided_slice %74 {offsets = [0, 32], sizes = [1, 32], strides = [1, 1]} : vector<1x128xf32> to vector<1x32xf32>
    %77 = vector.extract_strided_slice %74 {offsets = [0, 64], sizes = [1, 32], strides = [1, 1]} : vector<1x128xf32> to vector<1x32xf32>
    %78 = vector.extract_strided_slice %74 {offsets = [0, 96], sizes = [1, 32], strides = [1, 1]} : vector<1x128xf32> to vector<1x32xf32>
    %79 = arith.mulf %76, %57 : vector<1x32xf32>
    %80 = arith.mulf %75, %77 : vector<1x32xf32>
    %81 = arith.addf %79, %80 : vector<1x32xf32>
    %82 = math.tanh %81 : vector<1x32xf32>
    %83 = arith.mulf %78, %82 : vector<1x32xf32>
    %cst_23 = arith.constant 0.000000e+00 : f32
    %84 = vector.broadcast %cst_23 : f32 to vector<1x32xf32>
    %85 = arith.cmpf ogt, %83, %84 : vector<1x32xf32>
    %cst_24 = arith.constant 0.00999999977 : f32
    %86 = vector.broadcast %cst_24 : f32 to vector<1x32xf32>
    %87 = arith.mulf %86, %83 : vector<1x32xf32>
    %88 = arith.select %85, %83, %87 : vector<1x32xi1>, vector<1x32xf32>
    %89 = vector.extract_strided_slice %7 {offsets = [3, 0], sizes = [1, 128], strides = [1, 1]} : vector<8x128xf32> to vector<1x128xf32>
    %90 = arith.truncf %83 : vector<1x32xf32> to vector<1x32xbf16>
    %cst_25 = arith.constant dense<0.000000e+00> : vector<1x128xf32>
    %91 = tpu.matmul %90, %8, %cst_25 {dimension_numbers = #tpu.dot_dimension_numbers<[1], [0], [0], [1], [0, 0, 1, 1], [], []>} : vector<1x32xbf16>, vector<32x128xbf16>, vector<1x128xf32> -> vector<1x128xf32>
    %92 = arith.addf %89, %91 : vector<1x128xf32>
    %93 = math.tanh %92 : vector<1x128xf32>
    %cst_26 = arith.constant 5.000000e-01 : f32
    %94 = vector.broadcast %cst_26 : f32 to vector<1x128xf32>
    %95 = arith.mulf %94, %93 : vector<1x128xf32>
    %cst_27 = arith.constant 5.000000e-01 : f32
    %96 = vector.broadcast %cst_27 : f32 to vector<1x128xf32>
    %97 = arith.addf %95, %96 : vector<1x128xf32>
    %98 = arith.select %14, %93, %97 : vector<1x128xi1>, vector<1x128xf32>
    %99 = vector.extract_strided_slice %98 {offsets = [0, 0], sizes = [1, 32], strides = [1, 1]} : vector<1x128xf32> to vector<1x32xf32>
    %100 = vector.extract_strided_slice %98 {offsets = [0, 32], sizes = [1, 32], strides = [1, 1]} : vector<1x128xf32> to vector<1x32xf32>
    %101 = vector.extract_strided_slice %98 {offsets = [0, 64], sizes = [1, 32], strides = [1, 1]} : vector<1x128xf32> to vector<1x32xf32>
    %102 = vector.extract_strided_slice %98 {offsets = [0, 96], sizes = [1, 32], strides = [1, 1]} : vector<1x128xf32> to vector<1x32xf32>
    %103 = arith.mulf %100, %81 : vector<1x32xf32>
    %104 = arith.mulf %99, %101 : vector<1x32xf32>
    %105 = arith.addf %103, %104 : vector<1x32xf32>
    %106 = math.tanh %105 : vector<1x32xf32>
    %107 = arith.mulf %102, %106 : vector<1x32xf32>
    %cst_28 = arith.constant 0.000000e+00 : f32
    %108 = vector.broadcast %cst_28 : f32 to vector<1x32xf32>
    %109 = arith.cmpf ogt, %107, %108 : vector<1x32xf32>
    %cst_29 = arith.constant 0.00999999977 : f32
    %110 = vector.broadcast %cst_29 : f32 to vector<1x32xf32>
    %111 = arith.mulf %110, %107 : vector<1x32xf32>
    %112 = arith.select %109, %107, %111 : vector<1x32xi1>, vector<1x32xf32>
    %113 = vector.extract_strided_slice %7 {offsets = [4, 0], sizes = [1, 128], strides = [1, 1]} : vector<8x128xf32> to vector<1x128xf32>
    %114 = arith.truncf %107 : vector<1x32xf32> to vector<1x32xbf16>
    %cst_30 = arith.constant dense<0.000000e+00> : vector<1x128xf32>
    %115 = tpu.matmul %114, %8, %cst_30 {dimension_numbers = #tpu.dot_dimension_numbers<[1], [0], [0], [1], [0, 0, 1, 1], [], []>} : vector<1x32xbf16>, vector<32x128xbf16>, vector<1x128xf32> -> vector<1x128xf32>
    %116 = arith.addf %113, %115 : vector<1x128xf32>
    %117 = math.tanh %116 : vector<1x128xf32>
    %cst_31 = arith.constant 5.000000e-01 : f32
    %118 = vector.broadcast %cst_31 : f32 to vector<1x128xf32>
    %119 = arith.mulf %118, %117 : vector<1x128xf32>
    %cst_32 = arith.constant 5.000000e-01 : f32
    %120 = vector.broadcast %cst_32 : f32 to vector<1x128xf32>
    %121 = arith.addf %119, %120 : vector<1x128xf32>
    %122 = arith.select %14, %117, %121 : vector<1x128xi1>, vector<1x128xf32>
    %123 = vector.extract_strided_slice %122 {offsets = [0, 0], sizes = [1, 32], strides = [1, 1]} : vector<1x128xf32> to vector<1x32xf32>
    %124 = vector.extract_strided_slice %122 {offsets = [0, 32], sizes = [1, 32], strides = [1, 1]} : vector<1x128xf32> to vector<1x32xf32>
    %125 = vector.extract_strided_slice %122 {offsets = [0, 64], sizes = [1, 32], strides = [1, 1]} : vector<1x128xf32> to vector<1x32xf32>
    %126 = vector.extract_strided_slice %122 {offsets = [0, 96], sizes = [1, 32], strides = [1, 1]} : vector<1x128xf32> to vector<1x32xf32>
    %127 = arith.mulf %124, %105 : vector<1x32xf32>
    %128 = arith.mulf %123, %125 : vector<1x32xf32>
    %129 = arith.addf %127, %128 : vector<1x32xf32>
    %130 = math.tanh %129 : vector<1x32xf32>
    %131 = arith.mulf %126, %130 : vector<1x32xf32>
    %cst_33 = arith.constant 0.000000e+00 : f32
    %132 = vector.broadcast %cst_33 : f32 to vector<1x32xf32>
    %133 = arith.cmpf ogt, %131, %132 : vector<1x32xf32>
    %cst_34 = arith.constant 0.00999999977 : f32
    %134 = vector.broadcast %cst_34 : f32 to vector<1x32xf32>
    %135 = arith.mulf %134, %131 : vector<1x32xf32>
    %136 = arith.select %133, %131, %135 : vector<1x32xi1>, vector<1x32xf32>
    %137 = vector.extract_strided_slice %7 {offsets = [5, 0], sizes = [1, 128], strides = [1, 1]} : vector<8x128xf32> to vector<1x128xf32>
    %138 = arith.truncf %131 : vector<1x32xf32> to vector<1x32xbf16>
    %cst_35 = arith.constant dense<0.000000e+00> : vector<1x128xf32>
    %139 = tpu.matmul %138, %8, %cst_35 {dimension_numbers = #tpu.dot_dimension_numbers<[1], [0], [0], [1], [0, 0, 1, 1], [], []>} : vector<1x32xbf16>, vector<32x128xbf16>, vector<1x128xf32> -> vector<1x128xf32>
    %140 = arith.addf %137, %139 : vector<1x128xf32>
    %141 = math.tanh %140 : vector<1x128xf32>
    %cst_36 = arith.constant 5.000000e-01 : f32
    %142 = vector.broadcast %cst_36 : f32 to vector<1x128xf32>
    %143 = arith.mulf %142, %141 : vector<1x128xf32>
    %cst_37 = arith.constant 5.000000e-01 : f32
    %144 = vector.broadcast %cst_37 : f32 to vector<1x128xf32>
    %145 = arith.addf %143, %144 : vector<1x128xf32>
    %146 = arith.select %14, %141, %145 : vector<1x128xi1>, vector<1x128xf32>
    %147 = vector.extract_strided_slice %146 {offsets = [0, 0], sizes = [1, 32], strides = [1, 1]} : vector<1x128xf32> to vector<1x32xf32>
    %148 = vector.extract_strided_slice %146 {offsets = [0, 32], sizes = [1, 32], strides = [1, 1]} : vector<1x128xf32> to vector<1x32xf32>
    %149 = vector.extract_strided_slice %146 {offsets = [0, 64], sizes = [1, 32], strides = [1, 1]} : vector<1x128xf32> to vector<1x32xf32>
    %150 = vector.extract_strided_slice %146 {offsets = [0, 96], sizes = [1, 32], strides = [1, 1]} : vector<1x128xf32> to vector<1x32xf32>
    %151 = arith.mulf %148, %129 : vector<1x32xf32>
    %152 = arith.mulf %147, %149 : vector<1x32xf32>
    %153 = arith.addf %151, %152 : vector<1x32xf32>
    %154 = math.tanh %153 : vector<1x32xf32>
    %155 = arith.mulf %150, %154 : vector<1x32xf32>
    %cst_38 = arith.constant 0.000000e+00 : f32
    %156 = vector.broadcast %cst_38 : f32 to vector<1x32xf32>
    %157 = arith.cmpf ogt, %155, %156 : vector<1x32xf32>
    %cst_39 = arith.constant 0.00999999977 : f32
    %158 = vector.broadcast %cst_39 : f32 to vector<1x32xf32>
    %159 = arith.mulf %158, %155 : vector<1x32xf32>
    %160 = arith.select %157, %155, %159 : vector<1x32xi1>, vector<1x32xf32>
    %161 = vector.extract_strided_slice %7 {offsets = [6, 0], sizes = [1, 128], strides = [1, 1]} : vector<8x128xf32> to vector<1x128xf32>
    %162 = arith.truncf %155 : vector<1x32xf32> to vector<1x32xbf16>
    %cst_40 = arith.constant dense<0.000000e+00> : vector<1x128xf32>
    %163 = tpu.matmul %162, %8, %cst_40 {dimension_numbers = #tpu.dot_dimension_numbers<[1], [0], [0], [1], [0, 0, 1, 1], [], []>} : vector<1x32xbf16>, vector<32x128xbf16>, vector<1x128xf32> -> vector<1x128xf32>
    %164 = arith.addf %161, %163 : vector<1x128xf32>
    %165 = math.tanh %164 : vector<1x128xf32>
    %cst_41 = arith.constant 5.000000e-01 : f32
    %166 = vector.broadcast %cst_41 : f32 to vector<1x128xf32>
    %167 = arith.mulf %166, %165 : vector<1x128xf32>
    %cst_42 = arith.constant 5.000000e-01 : f32
    %168 = vector.broadcast %cst_42 : f32 to vector<1x128xf32>
    %169 = arith.addf %167, %168 : vector<1x128xf32>
    %170 = arith.select %14, %165, %169 : vector<1x128xi1>, vector<1x128xf32>
    %171 = vector.extract_strided_slice %170 {offsets = [0, 0], sizes = [1, 32], strides = [1, 1]} : vector<1x128xf32> to vector<1x32xf32>
    %172 = vector.extract_strided_slice %170 {offsets = [0, 32], sizes = [1, 32], strides = [1, 1]} : vector<1x128xf32> to vector<1x32xf32>
    %173 = vector.extract_strided_slice %170 {offsets = [0, 64], sizes = [1, 32], strides = [1, 1]} : vector<1x128xf32> to vector<1x32xf32>
    %174 = vector.extract_strided_slice %170 {offsets = [0, 96], sizes = [1, 32], strides = [1, 1]} : vector<1x128xf32> to vector<1x32xf32>
    %175 = arith.mulf %172, %153 : vector<1x32xf32>
    %176 = arith.mulf %171, %173 : vector<1x32xf32>
    %177 = arith.addf %175, %176 : vector<1x32xf32>
    %178 = math.tanh %177 : vector<1x32xf32>
    %179 = arith.mulf %174, %178 : vector<1x32xf32>
    %cst_43 = arith.constant 0.000000e+00 : f32
    %180 = vector.broadcast %cst_43 : f32 to vector<1x32xf32>
    %181 = arith.cmpf ogt, %179, %180 : vector<1x32xf32>
    %cst_44 = arith.constant 0.00999999977 : f32
    %182 = vector.broadcast %cst_44 : f32 to vector<1x32xf32>
    %183 = arith.mulf %182, %179 : vector<1x32xf32>
    %184 = arith.select %181, %179, %183 : vector<1x32xi1>, vector<1x32xf32>
    %185 = vector.extract_strided_slice %7 {offsets = [7, 0], sizes = [1, 128], strides = [1, 1]} : vector<8x128xf32> to vector<1x128xf32>
    %186 = arith.truncf %179 : vector<1x32xf32> to vector<1x32xbf16>
    %cst_45 = arith.constant dense<0.000000e+00> : vector<1x128xf32>
    %187 = tpu.matmul %186, %8, %cst_45 {dimension_numbers = #tpu.dot_dimension_numbers<[1], [0], [0], [1], [0, 0, 1, 1], [], []>} : vector<1x32xbf16>, vector<32x128xbf16>, vector<1x128xf32> -> vector<1x128xf32>
    %188 = arith.addf %185, %187 : vector<1x128xf32>
    %189 = math.tanh %188 : vector<1x128xf32>
    %cst_46 = arith.constant 5.000000e-01 : f32
    %190 = vector.broadcast %cst_46 : f32 to vector<1x128xf32>
    %191 = arith.mulf %190, %189 : vector<1x128xf32>
    %cst_47 = arith.constant 5.000000e-01 : f32
    %192 = vector.broadcast %cst_47 : f32 to vector<1x128xf32>
    %193 = arith.addf %191, %192 : vector<1x128xf32>
    %194 = arith.select %14, %189, %193 : vector<1x128xi1>, vector<1x128xf32>
    %195 = vector.extract_strided_slice %194 {offsets = [0, 0], sizes = [1, 32], strides = [1, 1]} : vector<1x128xf32> to vector<1x32xf32>
    %196 = vector.extract_strided_slice %194 {offsets = [0, 32], sizes = [1, 32], strides = [1, 1]} : vector<1x128xf32> to vector<1x32xf32>
    %197 = vector.extract_strided_slice %194 {offsets = [0, 64], sizes = [1, 32], strides = [1, 1]} : vector<1x128xf32> to vector<1x32xf32>
    %198 = vector.extract_strided_slice %194 {offsets = [0, 96], sizes = [1, 32], strides = [1, 1]} : vector<1x128xf32> to vector<1x32xf32>
    %199 = arith.mulf %196, %177 : vector<1x32xf32>
    %200 = arith.mulf %195, %197 : vector<1x32xf32>
    %201 = arith.addf %199, %200 : vector<1x32xf32>
    %202 = math.tanh %201 : vector<1x32xf32>
    %203 = arith.mulf %198, %202 : vector<1x32xf32>
    %cst_48 = arith.constant 0.000000e+00 : f32
    %204 = vector.broadcast %cst_48 : f32 to vector<1x32xf32>
    %205 = arith.cmpf ogt, %203, %204 : vector<1x32xf32>
    %cst_49 = arith.constant 0.00999999977 : f32
    %206 = vector.broadcast %cst_49 : f32 to vector<1x32xf32>
    %207 = arith.mulf %206, %203 : vector<1x32xf32>
    %208 = arith.select %205, %203, %207 : vector<1x32xi1>, vector<1x32xf32>
    %209 = tpu.concatenate %40, %64, %88, %112, %136, %160, %184, %208 in 1 : vector<1x32xf32>, vector<1x32xf32>, vector<1x32xf32>, vector<1x32xf32>, vector<1x32xf32>, vector<1x32xf32>, vector<1x32xf32>, vector<1x32xf32> -> vector<1x256xf32>
    %210 = vector.shape_cast %209 : vector<1x256xf32> to vector<1x1x256xf32>
    %c0_50 = arith.constant 0 : index
    %c0_51 = arith.constant 0 : index
    %c0_52 = arith.constant 0 : index
    %211 = vector.load %arg8[%c0_50, %c0_51, %c0_52] : memref<1x1x256xf32, #tpu.memory_space<vmem>>, vector<1x1x256xf32>
    tpu.vector_store %arg8[%c0_50, %c0_51, %c0_52], %210 {strides = array<i32>} : memref<1x1x256xf32, #tpu.memory_space<vmem>>, vector<1x1x256xf32>,
    %212 = tpu.concatenate %40, %64, %88, %112, %136, %160, %184, %208 in 0 : vector<1x32xf32>, vector<1x32xf32>, vector<1x32xf32>, vector<1x32xf32>, vector<1x32xf32>, vector<1x32xf32>, vector<1x32xf32>, vector<1x32xf32> -> vector<8x32xf32>
    %213 = arith.truncf %212 : vector<8x32xf32> to vector<8x32xbf16>
    %c0_53 = arith.constant 0 : index
    %c0_54 = arith.constant 0 : index
    %214 = vector.load %arg5[%c0_53, %c0_54] : memref<32x128xbf16, #tpu.memory_space<vmem>>, vector<32x128xbf16>
    %cst_55 = arith.constant dense<0.000000e+00> : vector<8x128xf32>
    %215 = tpu.matmul %213, %214, %cst_55 {dimension_numbers = #tpu.dot_dimension_numbers<[1], [0], [0], [1], [0, 0, 1, 1], [], []>} : vector<8x32xbf16>, vector<32x128xbf16>, vector<8x128xf32> -> vector<8x128xf32>
    %c0_56 = arith.constant 0 : index
    %c0_57 = arith.constant 0 : index
    %216 = vector.load %arg6[%c0_56, %c0_57] : memref<1x128xf32, #tpu.memory_space<vmem>>, vector<1x128xf32>
    %217 = vector.broadcast %216 : vector<1x128xf32> to vector<8x128xf32>
    %218 = arith.addf %215, %217 : vector<8x128xf32>
    %219 = vector.shape_cast %218 : vector<8x128xf32> to vector<1x8x128xf32>
    %c0_58 = arith.constant 0 : index
    %c0_59 = arith.constant 0 : index
    %c0_60 = arith.constant 0 : index
    %220 = vector.load %arg7[%c0_58, %c0_59, %c0_60] : memref<1x8x128xf32, #tpu.memory_space<vmem>>, vector<1x8x128xf32>
    tpu.vector_store %arg7[%c0_58, %c0_59, %c0_60], %219 {strides = array<i32>} : memref<1x8x128xf32, #tpu.memory_space<vmem>>, vector<1x8x128xf32>,
    return
  }
  func.func @transform_0(%arg0: i32) -> (i32, i32, i32) {
    %c0_i32 = arith.constant 0 : i32
    %c0_i32_0 = arith.constant 0 : i32
    %c0_i32_1 = arith.constant 0 : i32
    return %arg0, %c0_i32, %c0_i32_0 : i32, i32, i32
  }
  func.func @transform_1(%arg0: i32) -> (i32, i32) {
    %c0_i32 = arith.constant 0 : i32
    %c0_i32_0 = arith.constant 0 : i32
    %c0_i32_1 = arith.constant 0 : i32
    return %c0_i32, %c0_i32_0 : i32, i32
  }
  func.func @transform_2(%arg0: i32) -> (i32, i32) {
    %c0_i32 = arith.constant 0 : i32
    %c0_i32_0 = arith.constant 0 : i32
    %c0_i32_1 = arith.constant 0 : i32
    return %c0_i32, %c0_i32_0 : i32, i32
  }
  func.func @transform_3(%arg0: i32) -> (i32, i32) {
    %c0_i32 = arith.constant 0 : i32
    %c0_i32_0 = arith.constant 0 : i32
    %c0_i32_1 = arith.constant 0 : i32
    return %c0_i32, %c0_i32_0 : i32, i32
  }
  func.func @transform_4(%arg0: i32) -> (i32, i32) {
    %c0_i32 = arith.constant 0 : i32
    %c0_i32_0 = arith.constant 0 : i32
    %c0_i32_1 = arith.constant 0 : i32
    return %c0_i32, %c0_i32_0 : i32, i32
  }
  func.func @transform_5(%arg0: i32) -> (i32, i32) {
    %c0_i32 = arith.constant 0 : i32
    %c0_i32_0 = arith.constant 0 : i32
    %c0_i32_1 = arith.constant 0 : i32
    return %c0_i32, %c0_i32_0 : i32, i32
  }
  func.func @transform_6(%arg0: i32) -> (i32, i32, i32) {
    %c0_i32 = arith.constant 0 : i32
    %c0_i32_0 = arith.constant 0 : i32
    %c0_i32_1 = arith.constant 0 : i32
    return %arg0, %c0_i32, %c0_i32_0 : i32, i32, i32
  }
  func.func @transform_7(%arg0: i32) -> (i32, i32, i32) {
    %c0_i32 = arith.constant 0 : i32
    %c0_i32_0 = arith.constant 0 : i32
    %c0_i32_1 = arith.constant 0 : i32
    return %arg0, %c0_i32, %c0_i32_0 : i32, i32, i32
  }
}

</mosaic_0001>

<llo_original>
// kernel: ner_net_forward.1
$region0: #{ner_net_forward.1}
  #allocation0 [shape = 'u32[]', space=smem, size = 0x4, offset = 0x4, fixed_abs, tag = 'smem constant byte address 0x4 - core index']
  #allocation1 [shape = 'u32[72,128]{1,0:T(1,128)}', space=vmem, size = 0x9000, scoped, tag = 'internal scratch']
  %s0 = inlined_call_operand.hbm [shape: f32[2,8,32], index: 0, kind: input, shape index: {}]
  %s1 = inlined_call_operand.hbm [shape: bf16[32,128], index: 1, kind: input, shape index: {}]
  %s2 = inlined_call_operand.hbm [shape: bf16[32,128], index: 2, kind: input, shape index: {}]
  %s3 = inlined_call_operand.hbm [shape: f32[1,128], index: 3, kind: input, shape index: {}]
  %s4 = inlined_call_operand.hbm [shape: bf16[32,128], index: 4, kind: input, shape index: {}]
  %s5 = inlined_call_operand.vmem [shape: f32[1,128], index: 5, kind: input, shape index: {}]
  %s6 = inlined_call_operand.vmem [shape: f32[2,8,128], index: 6, kind: output, shape index: {0}]
  %s7 = inlined_call_operand.vmem [shape: f32[2,1,256], index: 7, kind: output, shape index: {1}]
  %8 = xla_tuple %s6, %s7
  %s9 = sld [smem:[#allocation0]]
  $region85: #{ner_net_forward.1} parent=0
    _
  %s11 = ssub.s32 1, %s9
  %s12 = scalar_select 0, %s11, %s9
  $region1: #{ner_net_forward.1} parent=0
    #allocation2 [shape = 'u8[8192]{0}', space=vmem, size = 0x2000, scoped, tag = 'input window, operand 0']
    #allocation3 [shape = 's32[2]{0}', space=sflag, size = 0x8, scoped, tag = 'scoped memory for ner_net_forward.1']
    #allocation4 [shape = 'u8[8192]{0}', space=vmem, size = 0x2000, scoped, tag = 'input window, operand 1, single buffered']
    #allocation5 [shape = 's32[1]{0}', space=sflag, size = 0x4, scoped, tag = 'scoped memory for ner_net_forward.1']
    #allocation6 [shape = 'u8[8192]{0}', space=vmem, size = 0x2000, scoped, tag = 'input window, operand 2, single buffered']
    #allocation7 [shape = 'u8[512]{0}', space=vmem, size = 0x400, scoped, tag = 'input window, operand 3, single buffered']
    #allocation8 [shape = 's32[1]{0}', space=sflag, size = 0x4, scoped, tag = 'scoped memory for ner_net_forward.1']
    #allocation9 [shape = 'u8[8192]{0}', space=vmem, size = 0x2000, scoped, tag = 'input window, operand 4, single buffered']
    %13 = vsyncpa [#allocation3], 0
    %s14 = scalar_lea.sflag [#allocation3], 1
    %15 = vsyncpa %s14, 0
    %16 = vsyncpa [#allocation5], 0
    %17 = vsyncpa [#allocation8], 0
    loop: start=0, step=1, limit=4
    $region2: #{ner_net_forward.1} parent=1 // loop_pre_header
      _
    $region3: #{ner_net_forward.1} parent=1 // loop_header
      %s19 = sphi 0, %s23
      %p20 = scmp.ge.s32.totalorder %s19, 4
      %s29 = sphi 0, %s31
      %s32 = sphi 0, %s29
      %s33 = sphi 0, %s32
      %s49 = sphi 0, %s33
      %s53 = sphi 0, %s53
      %s55 = sphi 0, %s53
      %s56 = sphi 0, %s55
      %s70 = sphi 0, %s56
      %s74 = sphi 0, %s74
      %s76 = sphi 0, %s74
      %s77 = sphi 0, %s76
      %s91 = sphi 0, %s77
      %s95 = sphi 0, %s95
      %s97 = sphi 0, %s95
      %s98 = sphi 0, %s97
      %s112 = sphi 0, %s98
      %s116 = sphi 0, %s116
      %s118 = sphi 0, %s116
      %s119 = sphi 0, %s118
      %s133 = sphi 0, %s119
      %s137 = sphi 0, %s137
      %s139 = sphi 0, %s137
      %s140 = sphi 0, %s139
      %s154 = sphi 0, %s140
      %s160 = sphi 0, %s162
      %s163 = sphi 0, %s160
      %s164 = sphi 0, %s163
      %s180 = sphi 0, %s164
      %s186 = sphi 0, %s188
      %s189 = sphi 0, %s186
      %s190 = sphi 0, %s189
      %s206 = sphi 0, %s190
    $region4: #{ner_net_forward.1} parent=1 // loop_header_branch
      %22 = sbr.rel (%p20) target = $region8
    $region5: #{ner_net_forward.1} parent=1 // loop_body
      %s24 = ssub.s32 %s19, 1
      %s25 = ssub.s32 %s19, 2
      %s26 = sadd.s32 %s19, 1
      %s27 = ssub.s32 %s19, %s26
      %p28 = scmp.eq.s32.totalorder %s27, 0
      %s30 = sadd.s32 %s29, 1
      %s31 = scalar_select %p28, %s29, %s30
      %p34 = pneg %p28
      %p35 = scmp.eq.s32.totalorder %s19, 1
      %p36 = por %p34, %p35
      %p37 = scmp.ne.s32.totalorder %s29, %s32
      %p38 = scmp.eq.s32.totalorder %s19, 0
      %p39 = por %p37, %p38
      %p40 = scmp.ne.s32.totalorder %s29, %s32
      %p41 = scmp.eq.s32.totalorder %s24, 1
      %p42 = por %p40, %p41
      %p43 = scmp.ne.s32.totalorder %s32, %s33
      %p44 = scmp.eq.s32.totalorder %s24, 0
      %p45 = por %p43, %p44
      %p46 = scmp.ne.s32.totalorder %s32, %s33
      %p47 = scmp.eq.s32.totalorder %s25, 1
      %p48 = por %p46, %p47
      %p50 = scmp.ne.s32.totalorder %s33, %s49
      %p51 = scmp.eq.s32.totalorder %s25, 0
      %p52 = por %p50, %p51
      %s54 = sadd.s32 %s53, 1
      %p57 = scmp.eq.s32.totalorder %s19, 1
      %p58 = scmp.ne.s32.totalorder %s53, %s55
      %p59 = scmp.eq.s32.totalorder %s19, 0
      %p60 = por %p58, %p59
      %p61 = scmp.ne.s32.totalorder %s53, %s55
      %p62 = scmp.eq.s32.totalorder %s24, 1
      %p63 = por %p61, %p62
      %p64 = scmp.ne.s32.totalorder %s55, %s56
      %p65 = scmp.eq.s32.totalorder %s24, 0
      %p66 = por %p64, %p65
      %p67 = scmp.ne.s32.totalorder %s55, %s56
      %p68 = scmp.eq.s32.totalorder %s25, 1
      %p69 = por %p67, %p68
      %p71 = scmp.ne.s32.totalorder %s56, %s70
      %p72 = scmp.eq.s32.totalorder %s25, 0
      %p73 = por %p71, %p72
      %s75 = sadd.s32 %s74, 1
      %p78 = scmp.eq.s32.totalorder %s19, 1
      %p79 = scmp.ne.s32.totalorder %s74, %s76
      %p80 = scmp.eq.s32.totalorder %s19, 0
      %p81 = por %p79, %p80
      %p82 = scmp.ne.s32.totalorder %s74, %s76
      %p83 = scmp.eq.s32.totalorder %s24, 1
      %p84 = por %p82, %p83
      %p85 = scmp.ne.s32.totalorder %s76, %s77
      %p86 = scmp.eq.s32.totalorder %s24, 0
      %p87 = por %p85, %p86
      %p88 = scmp.ne.s32.totalorder %s76, %s77
      %p89 = scmp.eq.s32.totalorder %s25, 1
      %p90 = por %p88, %p89
      %p92 = scmp.ne.s32.totalorder %s77, %s91
      %p93 = scmp.eq.s32.totalorder %s25, 0
      %p94 = por %p92, %p93
      %s96 = sadd.s32 %s95, 1
      %p99 = scmp.eq.s32.totalorder %s19, 1
      %p100 = scmp.ne.s32.totalorder %s95, %s97
      %p101 = scmp.eq.s32.totalorder %s19, 0
      %p102 = por %p100, %p101
      %p103 = scmp.ne.s32.totalorder %s95, %s97
      %p104 = scmp.eq.s32.totalorder %s24, 1
      %p105 = por %p103, %p104
      %p106 = scmp.ne.s32.totalorder %s97, %s98
      %p107 = scmp.eq.s32.totalorder %s24, 0
      %p108 = por %p106, %p107
      %p109 = scmp.ne.s32.totalorder %s97, %s98
      %p110 = scmp.eq.s32.totalorder %s25, 1
      %p111 = por %p109, %p110
      %p113 = scmp.ne.s32.totalorder %s98, %s112
      %p114 = scmp.eq.s32.totalorder %s25, 0
      %p115 = por %p113, %p114
      %s117 = sadd.s32 %s116, 1
      %p120 = scmp.eq.s32.totalorder %s19, 1
      %p121 = scmp.ne.s32.totalorder %s116, %s118
      %p122 = scmp.eq.s32.totalorder %s19, 0
      %p123 = por %p121, %p122
      %p124 = scmp.ne.s32.totalorder %s116, %s118
      %p125 = scmp.eq.s32.totalorder %s24, 1
      %p126 = por %p124, %p125
      %p127 = scmp.ne.s32.totalorder %s118, %s119
      %p128 = scmp.eq.s32.totalorder %s24, 0
      %p129 = por %p127, %p128
      %p130 = scmp.ne.s32.totalorder %s118, %s119
      %p131 = scmp.eq.s32.totalorder %s25, 1
      %p132 = por %p130, %p131
      %p134 = scmp.ne.s32.totalorder %s119, %s133
      %p135 = scmp.eq.s32.totalorder %s25, 0
      %p136 = por %p134, %p135
      %s138 = sadd.s32 %s137, 1
      %p141 = scmp.eq.s32.totalorder %s19, 1
      %p142 = scmp.ne.s32.totalorder %s137, %s139
      %p143 = scmp.eq.s32.totalorder %s19, 0
      %p144 = por %p142, %p143
      %p145 = scmp.ne.s32.totalorder %s137, %s139
      %p146 = scmp.eq.s32.totalorder %s24, 1
      %p147 = por %p145, %p146
      %p148 = scmp.ne.s32.totalorder %s139, %s140
      %p149 = scmp.eq.s32.totalorder %s24, 0
      %p150 = por %p148, %p149
      %p151 = scmp.ne.s32.totalorder %s139, %s140
      %p152 = scmp.eq.s32.totalorder %s25, 1
      %p153 = por %p151, %p152
      %p155 = scmp.ne.s32.totalorder %s140, %s154
      %p156 = scmp.eq.s32.totalorder %s25, 0
      %p157 = por %p155, %p156
      %s158 = ssub.s32 %s19, %s26
      %p159 = scmp.eq.s32.totalorder %s158, 0
      %s161 = sadd.s32 %s160, 1
      %s162 = scalar_select %p159, %s160, %s161
      %p165 = pneg %p159
      %p166 = scmp.eq.s32.totalorder %s19, 1
      %p167 = por %p165, %p166
      %p168 = scmp.ne.s32.totalorder %s160, %s163
      %p169 = scmp.eq.s32.totalorder %s19, 0
      %p170 = por %p168, %p169
      %p171 = scmp.ne.s32.totalorder %s160, %s163
      %p172 = scmp.eq.s32.totalorder %s24, 1
      %p173 = por %p171, %p172
      %p174 = scmp.ne.s32.totalorder %s163, %s164
      %p175 = scmp.eq.s32.totalorder %s24, 0
      %p176 = por %p174, %p175
      %p177 = scmp.ne.s32.totalorder %s163, %s164
      %p178 = scmp.eq.s32.totalorder %s25, 1
      %p179 = por %p177, %p178
      %p181 = scmp.ne.s32.totalorder %s164, %s180
      %p182 = scmp.eq.s32.totalorder %s25, 0
      %p183 = por %p181, %p182
      %s184 = ssub.s32 %s19, %s26
      %p185 = scmp.eq.s32.totalorder %s184, 0
      %s187 = sadd.s32 %s186, 1
      %s188 = scalar_select %p185, %s186, %s187
      %p191 = pneg %p185
      %p192 = scmp.eq.s32.totalorder %s19, 1
      %p193 = por %p191, %p192
      %p194 = scmp.ne.s32.totalorder %s186, %s189
      %p195 = scmp.eq.s32.totalorder %s19, 0
      %p196 = por %p194, %p195
      %p197 = scmp.ne.s32.totalorder %s186, %s189
      %p198 = scmp.eq.s32.totalorder %s24, 1
      %p199 = por %p197, %p198
      %p200 = scmp.ne.s32.totalorder %s189, %s190
      %p201 = scmp.eq.s32.totalorder %s24, 0
      %p202 = por %p200, %p201
      %p203 = scmp.ne.s32.totalorder %s189, %s190
      %p204 = scmp.eq.s32.totalorder %s25, 1
      %p205 = por %p203, %p204
      %p207 = scmp.ne.s32.totalorder %s190, %s206
      %p208 = scmp.eq.s32.totalorder %s25, 0
      %p209 = por %p207, %p208
      %p210 = scmp.le.s32.totalorder 1, %s19
      %p211 = scmp.lt.s32.totalorder %s19, 3
      %p212 = pnand %p210, %p211
      %p213 = pneg %p212
      // Predicated region
      $region9: #{ner_net_forward.1} parent=5 // pred_check
        _
      $region10: #{ner_net_forward.1} parent=5 // pred_check_branch
        %215 = sbr.rel (%p212) target = $region12
      $region11: #{ner_net_forward.1} parent=5 // pred_region
        %s216 = ssub.s32 %s19, 1
        // Predicated region
        $region13: #{ner_net_forward.1} parent=11 // pred_check
          %p217 = pneg %p66
        $region14: #{ner_net_forward.1} parent=11 // pred_check_branch
          %219 = sbr.rel (%p217) target = $region16
        $region15: #{ner_net_forward.1} parent=11 // pred_region
          %221 = vsyncadd [#allocation5], 0
          %s222 = sshll.u32 %s1, 4
          %s223 = int_to_ptr.hbm [resolvable:$true] %s222
          %s224 = sshll.u32 [#allocation4], 4
          %s225 = int_to_ptr.vmem [resolvable:$true] %s224
          %230 = dma.hbm_to_vmem [thread:$0]  %s223, 256, %s225, [#allocation5], 64, 64, 4
        $region16: #{ner_net_forward.1} parent=11 // pred_fallthru
          _
        // Predicated region
        $region17: #{ner_net_forward.1} parent=11 // pred_check
          %p231 = pneg %p87
        $region18: #{ner_net_forward.1} parent=11 // pred_check_branch
          %233 = sbr.rel (%p231) target = $region20
        $region19: #{ner_net_forward.1} parent=11 // pred_region
          %235 = vsyncadd [#allocation5], 0
          %s236 = sshll.u32 %s2, 4
          %s237 = int_to_ptr.hbm [resolvable:$true] %s236
          %s238 = sshll.u32 [#allocation6], 4
          %s239 = int_to_ptr.vmem [resolvable:$true] %s238
          %244 = dma.hbm_to_vmem [thread:$0]  %s237, 256, %s239, [#allocation5], 64, 64, 4
        $region20: #{ner_net_forward.1} parent=11 // pred_fallthru
          _
        // Predicated region
        $region21: #{ner_net_forward.1} parent=11 // pred_check
          %p245 = pneg %p108
        $region22: #{ner_net_forward.1} parent=11 // pred_check_branch
          %247 = sbr.rel (%p245) target = $region24
        $region23: #{ner_net_forward.1} parent=11 // pred_region
          %249 = vsyncadd [#allocation8], 0
          %s251 = sshll.u32 %s3, 4
          %s252 = int_to_ptr.hbm [resolvable:$true] %s251
          %s253 = sshll.u32 [#allocation7], 4
          %s254 = int_to_ptr.vmem [resolvable:$true] %s253
          %256 = dma.hbm_to_vmem [thread:$0]  %s252, 16, %s254, [#allocation8]
        $region24: #{ner_net_forward.1} parent=11 // pred_fallthru
          _
        // Predicated region
        $region25: #{ner_net_forward.1} parent=11 // pred_check
          %p257 = pneg %p129
        $region26: #{ner_net_forward.1} parent=11 // pred_check_branch
          %259 = sbr.rel (%p257) target = $region28
        $region27: #{ner_net_forward.1} parent=11 // pred_region
          %261 = vsyncadd [#allocation8], 0
          %s262 = sshll.u32 %s4, 4
          %s263 = int_to_ptr.hbm [resolvable:$true] %s262
          %s264 = sshll.u32 [#allocation9], 4
          %s265 = int_to_ptr.vmem [resolvable:$true] %s264
          %270 = dma.hbm_to_vmem [thread:$0]  %s263, 256, %s265, [#allocation8], 64, 64, 4
        $region28: #{ner_net_forward.1} parent=11 // pred_fallthru
          _
        // Predicated region
        $region29: #{ner_net_forward.1} parent=11 // pred_check
          %p271 = pneg %p150
        $region30: #{ner_net_forward.1} parent=11 // pred_check_branch
          %273 = sbr.rel (%p271) target = $region32
        $region31: #{ner_net_forward.1} parent=11 // pred_region
          _
        $region32: #{ner_net_forward.1} parent=11 // pred_fallthru
          _
      $region12: #{ner_net_forward.1} parent=5 // pred_fallthru
        _
      %p274 = scmp.lt.s32.totalorder %s19, 2
      // Predicated region
      $region33: #{ner_net_forward.1} parent=5 // pred_check
        %p275 = pneg %p274
      $region34: #{ner_net_forward.1} parent=5 // pred_check_branch
        %277 = sbr.rel (%p275) target = $region36
      $region35: #{ner_net_forward.1} parent=5 // pred_region
        // Predicated region
        $region37: #{ner_net_forward.1} parent=35 // pred_check
          %p278 = pneg %p39
        $region38: #{ner_net_forward.1} parent=35 // pred_check_branch
          %280 = sbr.rel (%p278) target = $region40
        $region39: #{ner_net_forward.1} parent=35 // pred_region
          %s281 = sand.u32 %s29, 1
          %s282 = scalar_lea.sflag [#allocation3], %s281
          %s283 = sand.u32 %s29, 1
          %s284 = smul.addr %s283, 8
          %s285 = scalar_lea.vmem [#allocation2], %s284
          %287 = vsyncadd %s282, 0
          %s288 = smul.addr %s19, 8
          %s289 = scalar_lea.hbm %s0, %s288
          %s291 = sshll.u32 %s289, 4
          %s292 = int_to_ptr.hbm [resolvable:$true] %s291
          %s293 = sshll.u32 %s285, 4
          %s294 = int_to_ptr.vmem [resolvable:$true] %s293
          %296 = dma.hbm_to_vmem [thread:$0]  %s292, 128, %s294, %s282
        $region40: #{ner_net_forward.1} parent=35 // pred_fallthru
          _
      $region36: #{ner_net_forward.1} parent=5 // pred_fallthru
        _
      %p297 = scmp.le.s32.totalorder 1, %s19
      %p298 = scmp.lt.s32.totalorder %s19, 3
      %p299 = pnand %p297, %p298
      %p300 = pneg %p299
      // Predicated region
      $region41: #{ner_net_forward.1} parent=5 // pred_check
        _
      $region42: #{ner_net_forward.1} parent=5 // pred_check_branch
        %302 = sbr.rel (%p299) target = $region44
      $region43: #{ner_net_forward.1} parent=5 // pred_region
        %s303 = ssub.s32 %s19, 1
        %s304 = sand.u32 %s32, 1
        %s305 = scalar_lea.sflag [#allocation3], %s304
        %s306 = sand.u32 %s32, 1
        %s307 = smul.addr %s306, 8
        %s308 = scalar_lea.vmem [#allocation2], %s307
        // Predicated region
        $region45: #{ner_net_forward.1} parent=43 // pred_check
          %p309 = pneg %p45
        $region46: #{ner_net_forward.1} parent=43 // pred_check_branch
          %311 = sbr.rel (%p309) target = $region48
        $region47: #{ner_net_forward.1} parent=43 // pred_region
          %313 = dma.done %s305, 128
        $region48: #{ner_net_forward.1} parent=43 // pred_fallthru
          _
        // Predicated region
        $region49: #{ner_net_forward.1} parent=43 // pred_check
          %p314 = pneg %p66
        $region50: #{ner_net_forward.1} parent=43 // pred_check_branch
          %316 = sbr.rel (%p314) target = $region52
        $region51: #{ner_net_forward.1} parent=43 // pred_region
          %318 = dma.done [#allocation5], 256
        $region52: #{ner_net_forward.1} parent=43 // pred_fallthru
          _
        // Predicated region
        $region53: #{ner_net_forward.1} parent=43 // pred_check
          %p319 = pneg %p87
        $region54: #{ner_net_forward.1} parent=43 // pred_check_branch
          %321 = sbr.rel (%p319) target = $region56
        $region55: #{ner_net_forward.1} parent=43 // pred_region
          %323 = dma.done [#allocation5], 256
        $region56: #{ner_net_forward.1} parent=43 // pred_fallthru
          _
        // Predicated region
        $region57: #{ner_net_forward.1} parent=43 // pred_check
          %p324 = pneg %p108
        $region58: #{ner_net_forward.1} parent=43 // pred_check_branch
          %326 = sbr.rel (%p324) target = $region60
        $region59: #{ner_net_forward.1} parent=43 // pred_region
          %328 = dma.done [#allocation8], 16
        $region60: #{ner_net_forward.1} parent=43 // pred_fallthru
          _
        // Predicated region
        $region61: #{ner_net_forward.1} parent=43 // pred_check
          %p329 = pneg %p129
        $region62: #{ner_net_forward.1} parent=43 // pred_check_branch
          %331 = sbr.rel (%p329) target = $region64
        $region63: #{ner_net_forward.1} parent=43 // pred_region
          %333 = dma.done [#allocation8], 256
        $region64: #{ner_net_forward.1} parent=43 // pred_fallthru
          _
        %s334 = sand.u32 %s32, 1
        %s335 = scalar_lea.sflag [#allocation3], %s334
        %s336 = sand.u32 %s32, 1
        %s337 = smul.addr %s336, 8
        %s338 = scalar_lea.vmem [#allocation2], %s337
        %p339 = pneg %p45
        %p340 = pneg %p42
        %p341 = pneg %p66
        %p342 = pneg %p63
        %p343 = pneg %p87
        %p344 = pneg %p84
        %p345 = pneg %p108
        %p346 = pneg %p105
        %p347 = pneg %p129
        %p348 = pneg %p126
        %p349 = pneg %p150
        %p350 = pneg %p147
        %p351 = pneg %p176
        %p352 = pneg %p173
        %p353 = scmp.lt.s32.totalorder %s24, 1
        %s354 = scalar_select %p353, %s24, 1
        %s355 = smul.addr %s354, 8
        %s356 = scalar_lea.vmem %s6, %s355
        %p357 = pneg %p202
        %p358 = pneg %p199
        %p359 = scmp.lt.s32.totalorder %s24, 1
        %s360 = scalar_select %p359, %s24, 1
        %s361 = smul.addr %s360, 2
        %s362 = scalar_lea.vmem %s7, %s361
        %p363 = scmp.lt.s32.totalorder %s24, 1
        %s364 = scalar_select %p363, %s24, 1
        %s365 = smul.addr %s364, 8
        %s366 = scalar_lea.vmem %s6, %s365
        %p367 = scmp.lt.s32.totalorder %s24, 1
        %s368 = scalar_select %p367, %s24, 1
        %s369 = smul.addr %s368, 2
        %s370 = scalar_lea.vmem %s7, %s369
        %v372 = vld [vmem:[%s308] sm:$0xff]
        %v373 = vpack.c.bf16 %v372, %v372
        %v374 = vld [vmem:[#allocation4] sm:$0xf]
        %v375 = vld [vmem:[#allocation4 + $0x4] sm:$0xf]
        %v376 = vld [vmem:[#allocation4 + $0x8] sm:$0xf]
        %v377 = vld [vmem:[#allocation4 + $0xc] sm:$0xf]
        %v378 = vld [vmem:[#allocation7] sm:$0x1]
        %v380 = vperm.slane %v378, 0
        %v386 = vunpack.c.l.b16 %v374
        %v387 = vunpack.c.l.b16 %v375
        %v388 = vunpack.c.l.b16 %v376
        %v389 = vunpack.c.l.b16 %v377
        %v390 = vpack.c.b16 %v387, %v386
        %v391 = vpack.c.b16 %v389, %v388
        %vm394 = vcmask 261120
        %v396 = vsel %vm394, %v373, 0
        %398 = vmatpush.bf16.msra.mxu0 0
        %399 = vmatpush.bf16.msra.mxu0 0
        %400 = vmatpush.bf16.msra.mxu0 0
        %401 = vmatpush.bf16.msra.mxu0 0
        %402 = vmatpush.bf16.msra.mxu0 0
        %403 = vmatpush.bf16.msra.mxu0 0
        %404 = vmatpush.bf16.msra.mxu0 %v391
        %405 = vmatpush.bf16.msra.mxu0 %v390
        %406 = vmatmul.bf16.gmra.mxu0 %v396
        %v407 = vpop.f32.mrf.mxu0
        %v408 = vadd.f32 %v380, %v407
        %v409 = vpop.f32.mrf.mxu0
        %410 = vdwg.mxu0
        %v411 = vld [vmem:[#allocation6] sm:$0xf]
        %v412 = vld [vmem:[#allocation6 + $0x4] sm:$0xf]
        %v413 = vld [vmem:[#allocation6 + $0x8] sm:$0xf]
        %v414 = vld [vmem:[#allocation6 + $0xc] sm:$0xf]
        %v415 = vlaneseq
        %v416 = vand.u32 %v415, 127
        %vm417 = vcmp.ge.s32.totalorder %v416, 64
        %vm418 = vcmp.lt.s32.totalorder %v416, 96
        %vm419 = vmand %vm417, %vm418
        %v424 = vunpack.c.l.b16 %v411
        %v425 = vunpack.c.l.b16 %v412
        %v426 = vunpack.c.l.b16 %v413
        %v427 = vunpack.c.l.b16 %v414
        %v428 = vpack.c.b16 %v425, %v424
        %v429 = vpack.c.b16 %v427, %v426
        %v433 = vsel %vm394, 0, 0
        %435 = vmatpush.bf16.msra.mxu0 0
        %436 = vmatpush.bf16.msra.mxu0 0
        %437 = vmatpush.bf16.msra.mxu0 0
        %438 = vmatpush.bf16.msra.mxu0 0
        %439 = vmatpush.bf16.msra.mxu0 0
        %440 = vmatpush.bf16.msra.mxu0 0
        %441 = vmatpush.bf16.msra.mxu0 %v429
        %442 = vmatpush.bf16.msra.mxu0 %v428
        %443 = vmatmul.bf16.gmra.mxu0 %v433
        %v444 = vpop.f32.mrf.mxu0
        %v445 = vadd.f32 0.0, %v444
        %v446 = vpop.f32.mrf.mxu0
        %447 = vdwg.mxu0
        %v448 = vadd.f32 %v408, %v445
        %v449 = vtanh.pop %v448
        %v450 = vmul.f32 %v449, 0.5
        %v451 = vadd.f32 %v450, 0.5
        %v452 = vsel %vm419, %v449, %v451
        %v453 = vmul.f32 %v452, 0.0
        %455 = vrot.lane.b32.xlu0 %v452, 64
        %v456 = vpop.permute.xlu0 %455
        %v458 = vmul.f32 %v452, %v456
        %460 = vrot.lane.b32.xlu0 %v458, 32
        %v461 = vpop.permute.xlu0 %460
        %v463 = vadd.f32 %v453, %v461
        %v464 = vtanh.pop %v463
        %466 = vrot.lane.b32.xlu0 %v464, 64
        %v467 = vpop.permute.xlu0 %466
        %v469 = vmul.f32 %v452, %v467
        %vm470 = vcmp.gt.f32.partialorder %v469, 0.0
        %v471 = vmul.f32 %v469, 0.01
        %v472 = vsel %vm470, %v469, %v471
        %v473 = vpack.c.bf16 %v469, %v469
        %475 = vrot.lane.b32.xlu0 %v473, 32
        %v476 = vpop.permute.xlu0 %475
        %v478 = vsel %vm394, %v476, 0
        %480 = vmatpush.bf16.msra.mxu0 0
        %481 = vmatpush.bf16.msra.mxu0 0
        %482 = vmatpush.bf16.msra.mxu0 0
        %483 = vmatpush.bf16.msra.mxu0 0
        %484 = vmatpush.bf16.msra.mxu0 0
        %485 = vmatpush.bf16.msra.mxu0 0
        %486 = vmatpush.bf16.msra.mxu0 %v429
        %487 = vmatpush.bf16.msra.mxu0 %v428
        %488 = vmatmul.bf16.gmra.mxu0 %v478
        %v489 = vpop.f32.mrf.mxu0
        %v490 = vadd.f32 0.0, %v489
        %v491 = vpop.f32.mrf.mxu0
        %492 = vdwg.mxu0
        %v494 = vrot.slane %v490, 7
        %v496 = vadd.f32 %v408, %v494
        %v497 = vtanh.pop %v496
        %v498 = vmul.f32 %v497, 0.5
        %v499 = vadd.f32 %v498, 0.5
        %v500 = vsel %vm419, %v497, %v499
        %v502 = vrot.slane %v463, 7
        %v504 = vmul.f32 %v500, %v502
        %506 = vrot.lane.b32.xlu0 %v500, 64
        %v507 = vpop.permute.xlu0 %506
        %v509 = vmul.f32 %v500, %v507
        %511 = vrot.lane.b32.xlu0 %v509, 32
        %v512 = vpop.permute.xlu0 %511
        %v514 = vadd.f32 %v504, %v512
        %v515 = vtanh.pop %v514
        %517 = vrot.lane.b32.xlu0 %v515, 64
        %v518 = vpop.permute.xlu0 %517
        %v520 = vmul.f32 %v500, %v518
        %vm521 = vcmp.gt.f32.partialorder %v520, 0.0
        %v522 = vmul.f32 %v520, 0.01
        %v523 = vsel %vm521, %v520, %v522
        %v524 = vpack.c.bf16 %v520, %v520
        %v526 = vshrl.u32 %v524, 16
        %528 = vrot.lane.b32.xlu0 %v526, 32
        %v529 = vpop.permute.xlu0 %528
        %v531 = vsel %vm394, %v529, 0
        %533 = vmatpush.bf16.msra.mxu0 0
        %534 = vmatpush.bf16.msra.mxu0 0
        %535 = vmatpush.bf16.msra.mxu0 0
        %536 = vmatpush.bf16.msra.mxu0 0
        %537 = vmatpush.bf16.msra.mxu0 0
        %538 = vmatpush.bf16.msra.mxu0 0
        %539 = vmatpush.bf16.msra.mxu0 %v429
        %540 = vmatpush.bf16.msra.mxu0 %v428
        %541 = vmatmul.bf16.gmra.mxu0 %v531
        %v542 = vpop.f32.mrf.mxu0
        %v543 = vadd.f32 0.0, %v542
        %v544 = vpop.f32.mrf.mxu0
        %545 = vdwg.mxu0
        %v547 = vrot.slane %v543, 6
        %v549 = vadd.f32 %v408, %v547
        %v550 = vtanh.pop %v549
        %v551 = vmul.f32 %v550, 0.5
        %v552 = vadd.f32 %v551, 0.5
        %v553 = vsel %vm419, %v550, %v552
        %v555 = vrot.slane %v514, 7
        %v557 = vmul.f32 %v553, %v555
        %559 = vrot.lane.b32.xlu0 %v553, 64
        %v560 = vpop.permute.xlu0 %559
        %v562 = vmul.f32 %v553, %v560
        %564 = vrot.lane.b32.xlu0 %v562, 32
        %v565 = vpop.permute.xlu0 %564
        %v567 = vadd.f32 %v557, %v565
        %v568 = vtanh.pop %v567
        %570 = vrot.lane.b32.xlu0 %v568, 64
        %v571 = vpop.permute.xlu0 %570
        %v573 = vmul.f32 %v553, %v571
        %vm574 = vcmp.gt.f32.partialorder %v573, 0.0
        %v575 = vmul.f32 %v573, 0.01
        %v576 = vsel %vm574, %v573, %v575
        %v577 = vpack.c.bf16 %v573, %v573
        %v579 = vrot.slane %v577, 1
        %580 = vrot.lane.b32.xlu0 %v579, 32
        %v581 = vpop.permute.xlu0 %580
        %v583 = vsel %vm394, %v581, 0
        %585 = vmatpush.bf16.msra.mxu0 0
        %586 = vmatpush.bf16.msra.mxu0 0
        %587 = vmatpush.bf16.msra.mxu0 0
        %588 = vmatpush.bf16.msra.mxu0 0
        %589 = vmatpush.bf16.msra.mxu0 0
        %590 = vmatpush.bf16.msra.mxu0 0
        %591 = vmatpush.bf16.msra.mxu0 %v429
        %592 = vmatpush.bf16.msra.mxu0 %v428
        %593 = vmatmul.bf16.gmra.mxu0 %v583
        %v594 = vpop.f32.mrf.mxu0
        %v595 = vadd.f32 0.0, %v594
        %v596 = vpop.f32.mrf.mxu0
        %597 = vdwg.mxu0
        %v599 = vrot.slane %v595, 5
        %v601 = vadd.f32 %v408, %v599
        %v602 = vtanh.pop %v601
        %v603 = vmul.f32 %v602, 0.5
        %v604 = vadd.f32 %v603, 0.5
        %v605 = vsel %vm419, %v602, %v604
        %v607 = vrot.slane %v567, 7
        %v609 = vmul.f32 %v605, %v607
        %611 = vrot.lane.b32.xlu0 %v605, 64
        %v612 = vpop.permute.xlu0 %611
        %v614 = vmul.f32 %v605, %v612
        %616 = vrot.lane.b32.xlu0 %v614, 32
        %v617 = vpop.permute.xlu0 %616
        %v619 = vadd.f32 %v609, %v617
        %v620 = vtanh.pop %v619
        %622 = vrot.lane.b32.xlu0 %v620, 64
        %v623 = vpop.permute.xlu0 %622
        %v625 = vmul.f32 %v605, %v623
        %vm626 = vcmp.gt.f32.partialorder %v625, 0.0
        %v627 = vmul.f32 %v625, 0.01
        %v628 = vsel %vm626, %v625, %v627
        %v629 = vpack.c.bf16 %v625, %v625
        %v631 = vshrl.u32 %v629, 16
        %v633 = vrot.slane %v631, 1
        %634 = vrot.lane.b32.xlu0 %v633, 32
        %v635 = vpop.permute.xlu0 %634
        %v637 = vsel %vm394, %v635, 0
        %639 = vmatpush.bf16.msra.mxu0 0
        %640 = vmatpush.bf16.msra.mxu0 0
        %641 = vmatpush.bf16.msra.mxu0 0
        %642 = vmatpush.bf16.msra.mxu0 0
        %643 = vmatpush.bf16.msra.mxu0 0
        %644 = vmatpush.bf16.msra.mxu0 0
        %645 = vmatpush.bf16.msra.mxu0 %v429
        %646 = vmatpush.bf16.msra.mxu0 %v428
        %647 = vmatmul.bf16.gmra.mxu0 %v637
        %v648 = vpop.f32.mrf.mxu0
        %v649 = vadd.f32 0.0, %v648
        %v650 = vpop.f32.mrf.mxu0
        %651 = vdwg.mxu0
        %v653 = vrot.slane %v649, 4
        %v655 = vadd.f32 %v408, %v653
        %v656 = vtanh.pop %v655
        %v657 = vmul.f32 %v656, 0.5
        %v658 = vadd.f32 %v657, 0.5
        %v659 = vsel %vm419, %v656, %v658
        %v661 = vrot.slane %v619, 7
        %v663 = vmul.f32 %v659, %v661
        %665 = vrot.lane.b32.xlu0 %v659, 64
        %v666 = vpop.permute.xlu0 %665
        %v668 = vmul.f32 %v659, %v666
        %670 = vrot.lane.b32.xlu0 %v668, 32
        %v671 = vpop.permute.xlu0 %670
        %v673 = vadd.f32 %v663, %v671
        %v674 = vtanh.pop %v673
        %676 = vrot.lane.b32.xlu0 %v674, 64
        %v677 = vpop.permute.xlu0 %676
        %v679 = vmul.f32 %v659, %v677
        %vm680 = vcmp.gt.f32.partialorder %v679, 0.0
        %v681 = vmul.f32 %v679, 0.01
        %v682 = vsel %vm680, %v679, %v681
        %v683 = vpack.c.bf16 %v679, %v679
        %v685 = vrot.slane %v683, 2
        %686 = vrot.lane.b32.xlu0 %v685, 32
        %v687 = vpop.permute.xlu0 %686
        %v689 = vsel %vm394, %v687, 0
        %691 = vmatpush.bf16.msra.mxu0 0
        %692 = vmatpush.bf16.msra.mxu0 0
        %693 = vmatpush.bf16.msra.mxu0 0
        %694 = vmatpush.bf16.msra.mxu0 0
        %695 = vmatpush.bf16.msra.mxu0 0
        %696 = vmatpush.bf16.msra.mxu0 0
        %697 = vmatpush.bf16.msra.mxu0 %v429
        %698 = vmatpush.bf16.msra.mxu0 %v428
        %699 = vmatmul.bf16.gmra.mxu0 %v689
        %v700 = vpop.f32.mrf.mxu0
        %v701 = vadd.f32 0.0, %v700
        %v702 = vpop.f32.mrf.mxu0
        %703 = vdwg.mxu0
        %v705 = vrot.slane %v701, 3
        %v707 = vadd.f32 %v408, %v705
        %v708 = vtanh.pop %v707
        %v709 = vmul.f32 %v708, 0.5
        %v710 = vadd.f32 %v709, 0.5
        %v711 = vsel %vm419, %v708, %v710
        %v713 = vrot.slane %v673, 7
        %v715 = vmul.f32 %v711, %v713
        %717 = vrot.lane.b32.xlu0 %v711, 64
        %v718 = vpop.permute.xlu0 %717
        %v720 = vmul.f32 %v711, %v718
        %722 = vrot.lane.b32.xlu0 %v720, 32
        %v723 = vpop.permute.xlu0 %722
        %v725 = vadd.f32 %v715, %v723
        %v726 = vtanh.pop %v725
        %728 = vrot.lane.b32.xlu0 %v726, 64
        %v729 = vpop.permute.xlu0 %728
        %v731 = vmul.f32 %v711, %v729
        %vm732 = vcmp.gt.f32.partialorder %v731, 0.0
        %v733 = vmul.f32 %v731, 0.01
        %v734 = vsel %vm732, %v731, %v733
        %v735 = vpack.c.bf16 %v731, %v731
        %v737 = vshrl.u32 %v735, 16
        %v739 = vrot.slane %v737, 2
        %740 = vrot.lane.b32.xlu0 %v739, 32
        %v741 = vpop.permute.xlu0 %740
        %v743 = vsel %vm394, %v741, 0
        %745 = vmatpush.bf16.msra.mxu0 0
        %746 = vmatpush.bf16.msra.mxu0 0
        %747 = vmatpush.bf16.msra.mxu0 0
        %748 = vmatpush.bf16.msra.mxu0 0
        %749 = vmatpush.bf16.msra.mxu0 0
        %750 = vmatpush.bf16.msra.mxu0 0
        %751 = vmatpush.bf16.msra.mxu0 %v429
        %752 = vmatpush.bf16.msra.mxu0 %v428
        %753 = vmatmul.bf16.gmra.mxu0 %v743
        %v754 = vpop.f32.mrf.mxu0
        %v755 = vadd.f32 0.0, %v754
        %v756 = vpop.f32.mrf.mxu0
        %757 = vdwg.mxu0
        %v759 = vrot.slane %v755, 2
        %v761 = vadd.f32 %v408, %v759
        %v762 = vtanh.pop %v761
        %v763 = vmul.f32 %v762, 0.5
        %v764 = vadd.f32 %v763, 0.5
        %v765 = vsel %vm419, %v762, %v764
        %v767 = vrot.slane %v725, 7
        %v769 = vmul.f32 %v765, %v767
        %771 = vrot.lane.b32.xlu0 %v765, 64
        %v772 = vpop.permute.xlu0 %771
        %v774 = vmul.f32 %v765, %v772
        %776 = vrot.lane.b32.xlu0 %v774, 32
        %v777 = vpop.permute.xlu0 %776
        %v779 = vadd.f32 %v769, %v777
        %v780 = vtanh.pop %v779
        %782 = vrot.lane.b32.xlu0 %v780, 64
        %v783 = vpop.permute.xlu0 %782
        %v785 = vmul.f32 %v765, %v783
        %vm786 = vcmp.gt.f32.partialorder %v785, 0.0
        %v787 = vmul.f32 %v785, 0.01
        %v788 = vsel %vm786, %v785, %v787
        %v789 = vpack.c.bf16 %v785, %v785
        %v791 = vrot.slane %v789, 3
        %792 = vrot.lane.b32.xlu0 %v791, 32
        %v793 = vpop.permute.xlu0 %792
        %v795 = vsel %vm394, %v793, 0
        %797 = vmatpush.bf16.msra.mxu0 0
        %798 = vmatpush.bf16.msra.mxu0 0
        %799 = vmatpush.bf16.msra.mxu0 0
        %800 = vmatpush.bf16.msra.mxu0 0
        %801 = vmatpush.bf16.msra.mxu0 0
        %802 = vmatpush.bf16.msra.mxu0 0
        %803 = vmatpush.bf16.msra.mxu0 %v429
        %804 = vmatpush.bf16.msra.mxu0 %v428
        %805 = vmatmul.bf16.gmra.mxu0 %v795
        %v806 = vpop.f32.mrf.mxu0
        %v807 = vadd.f32 0.0, %v806
        %v808 = vpop.f32.mrf.mxu0
        %809 = vdwg.mxu0
        %v811 = vrot.slane %v807, 1
        %v813 = vadd.f32 %v408, %v811
        %v814 = vtanh.pop %v813
        %v815 = vmul.f32 %v814, 0.5
        %v816 = vadd.f32 %v815, 0.5
        %v817 = vsel %vm419, %v814, %v816
        %v819 = vrot.slane %v779, 7
        %v821 = vmul.f32 %v817, %v819
        %823 = vrot.lane.b32.xlu0 %v817, 64
        %v824 = vpop.permute.xlu0 %823
        %v826 = vmul.f32 %v817, %v824
        %828 = vrot.lane.b32.xlu0 %v826, 32
        %v829 = vpop.permute.xlu0 %828
        %v831 = vadd.f32 %v821, %v829
        %v832 = vtanh.pop %v831
        %834 = vrot.lane.b32.xlu0 %v832, 64
        %v835 = vpop.permute.xlu0 %834
        %v837 = vmul.f32 %v817, %v835
        %vm838 = vcmp.gt.f32.partialorder %v837, 0.0
        %v839 = vmul.f32 %v837, 0.01
        %v840 = vsel %vm838, %v837, %v839
        %842 = vrot.lane.b32.xlu0 %v472, 32
        %v843 = vpop.permute.xlu0 %842
        %v846 = vrot.slane %v523, 1
        %847 = vrot.lane.b32.xlu0 %v846, 64
        %v848 = vpop.permute.xlu0 %847
        %v851 = vrot.slane %v576, 2
        %852 = vrot.lane.b32.xlu0 %v851, 96
        %v853 = vpop.permute.xlu0 %852
        %v856 = vrot.slane %v628, 3
        %v859 = vrot.slane %v682, 4
        %860 = vrot.lane.b32.xlu0 %v859, 32
        %v861 = vpop.permute.xlu0 %860
        %v864 = vrot.slane %v734, 5
        %865 = vrot.lane.b32.xlu0 %v864, 64
        %v866 = vpop.permute.xlu0 %865
        %v869 = vrot.slane %v788, 6
        %870 = vrot.lane.b32.xlu0 %v869, 96
        %v871 = vpop.permute.xlu0 %870
        %v874 = vrot.slane %v840, 7
        %v876 = vsel %vm394, %v843, %v848
        %vm877 = vcmask 523264
        %v878 = vsel %vm877, %v876, %v853
        %vm879 = vcmask 785408
        %v880 = vsel %vm879, %v878, %v856
        %v881 = vsel %vm394, %v861, %v866
        %v882 = vsel %vm877, %v881, %v871
        %v883 = vsel %vm879, %v882, %v874
        %v886 = vrot.slane %v883, 7
        %vm887 = vcmask 1040384
        %v888 = vsel %vm887, %v880, %v886
        %v890 = vlaneseq
        %vm891 = vcmp.ge.s32.totalorder %v890, 0
        %vm892 = vcmp.lt.s32.totalorder %v890, 256
        %vm893 = vmand %vm891, %vm892
        %894 = vst.msk [vmem:[%s370] sm:$0x3] %vm893, %v888
        %v895 = vsel %vm887, %v472, %v523
        %vm896 = vcmask 1041408
        %v897 = vsel %vm896, %v895, %v576
        %vm898 = vcmask 1042432
        %v899 = vsel %vm898, %v897, %v628
        %vm900 = vcmask 1043456
        %v901 = vsel %vm900, %v899, %v682
        %vm902 = vcmask 1044480
        %v903 = vsel %vm902, %v901, %v734
        %vm904 = vcmask 1045504
        %v905 = vsel %vm904, %v903, %v788
        %vm906 = vcmask 1046528
        %v907 = vsel %vm906, %v905, %v840
        %v908 = vpack.c.bf16 %v907, %v907
        %v909 = vld [vmem:[#allocation9] sm:$0xf]
        %v910 = vld [vmem:[#allocation9 + $0x4] sm:$0xf]
        %v911 = vld [vmem:[#allocation9 + $0x8] sm:$0xf]
        %v912 = vld [vmem:[#allocation9 + $0xc] sm:$0xf]
        %v913 = vld [vmem:[%s5] sm:$0x1]
        %v915 = vperm.slane %v913, 0
        %918 = vrot.lane.b32.xlu0 %v908, 32
        %v919 = vpop.permute.xlu0 %918
        %v924 = vunpack.c.l.b16 %v909
        %v925 = vunpack.c.l.b16 %v910
        %v926 = vunpack.c.l.b16 %v911
        %v927 = vunpack.c.l.b16 %v912
        %v928 = vpack.c.b16 %v925, %v924
        %v929 = vpack.c.b16 %v927, %v926
        %v933 = vsel %vm394, %v919, 0
        %935 = vmatpush.bf16.msra.mxu0 0
        %936 = vmatpush.bf16.msra.mxu0 0
        %937 = vmatpush.bf16.msra.mxu0 0
        %938 = vmatpush.bf16.msra.mxu0 0
        %939 = vmatpush.bf16.msra.mxu0 0
        %940 = vmatpush.bf16.msra.mxu0 0
        %941 = vmatpush.bf16.msra.mxu0 %v929
        %942 = vmatpush.bf16.msra.mxu0 %v928
        %943 = vmatmul.bf16.gmra.mxu0 %v933
        %v944 = vpop.f32.mrf.mxu0
        %v945 = vadd.f32 %v915, %v944
        %v946 = vpop.f32.mrf.mxu0
        %947 = vdwg.mxu0
        %948 = vst [vmem:[%s366] sm:$0xff] %v945
        %p949 = scmp.lt.s32.totalorder %s24, 1
        %s950 = scalar_select %p949, %s24, 1
        %s951 = smul.addr %s950, 8
        %s952 = scalar_lea.vmem %s6, %s951
        %p953 = scmp.lt.s32.totalorder %s24, 1
        %s954 = scalar_select %p953, %s24, 1
        %s955 = smul.addr %s954, 2
        %s956 = scalar_lea.vmem %s7, %s955
        // Predicated region
        $region65: #{ner_net_forward.1} parent=43 // pred_check
          %p957 = pneg %p173
        $region66: #{ner_net_forward.1} parent=43 // pred_check_branch
          %959 = sbr.rel (%p957) target = $region68
        $region67: #{ner_net_forward.1} parent=43 // pred_region
          _
        $region68: #{ner_net_forward.1} parent=43 // pred_fallthru
          _
        // Predicated region
        $region69: #{ner_net_forward.1} parent=43 // pred_check
          %p960 = pneg %p199
        $region70: #{ner_net_forward.1} parent=43 // pred_check_branch
          %962 = sbr.rel (%p960) target = $region72
        $region71: #{ner_net_forward.1} parent=43 // pred_region
          _
        $region72: #{ner_net_forward.1} parent=43 // pred_fallthru
          _
      $region44: #{ner_net_forward.1} parent=5 // pred_fallthru
        _
      %p963 = scmp.le.s32.totalorder 2, %s19
      // Predicated region
      $region73: #{ner_net_forward.1} parent=5 // pred_check
        %p964 = pneg %p963
      $region74: #{ner_net_forward.1} parent=5 // pred_check_branch
        %966 = sbr.rel (%p964) target = $region76
      $region75: #{ner_net_forward.1} parent=5 // pred_region
        %s967 = ssub.s32 %s19, 2
        // Predicated region
        $region77: #{ner_net_forward.1} parent=75 // pred_check
          %p968 = pneg %p179
        $region78: #{ner_net_forward.1} parent=75 // pred_check_branch
          %970 = sbr.rel (%p968) target = $region80
        $region79: #{ner_net_forward.1} parent=75 // pred_region
          %p971 = scmp.lt.s32.totalorder %s25, 1
          %s972 = scalar_select %p971, %s25, 1
          %s973 = smul.addr %s972, 8
          %s974 = scalar_lea.vmem %s6, %s973
        $region80: #{ner_net_forward.1} parent=75 // pred_fallthru
          _
        // Predicated region
        $region81: #{ner_net_forward.1} parent=75 // pred_check
          %p975 = pneg %p205
        $region82: #{ner_net_forward.1} parent=75 // pred_check_branch
          %977 = sbr.rel (%p975) target = $region84
        $region83: #{ner_net_forward.1} parent=75 // pred_region
          %p978 = scmp.lt.s32.totalorder %s25, 1
          %s979 = scalar_select %p978, %s25, 1
          %s980 = smul.addr %s979, 2
          %s981 = scalar_lea.vmem %s7, %s980
        $region84: #{ner_net_forward.1} parent=75 // pred_fallthru
          _
      $region76: #{ner_net_forward.1} parent=5 // pred_fallthru
        _
    $region6: #{ner_net_forward.1} parent=1 // loop_footer
      %s23 = sadd.s32 1, %s19
    $region7: #{ner_net_forward.1} parent=1 // loop_footer_branch
      %18 = sbr.rel target = $region3
    $region8: #{ner_net_forward.1} parent=1 // loop_exit
      _
    %982 = vsyncpa [#allocation3], 1
    %s983 = scalar_lea.sflag [#allocation3], 1
    %984 = vsyncpa %s983, 1
    %985 = vsyncpa [#allocation5], 1
    %986 = vsyncpa [#allocation8], 1

</llo_original>
